<compile_context>
chip_gen: v5e
topology: v5e:2x2
jax: 0.10.0
libtpu: 0.0.40
codegen_flags: <defaults>
</compile_context>

<pallas_src>
import functools

import jax
import jax.numpy as jnp
from jax.experimental import pallas as pl
from jax.experimental.pallas import tpu as pltpu


def _round_up(n: int, m: int) -> int:
    return -(-n // m) * m


# ----------------------------------------------------------------------------
# Kernel
# ----------------------------------------------------------------------------
def _make_mlp_kernel(num_layers: int):
    """Fused MLP kernel: ReLU on every layer except the last."""

    def kernel(x_ref, *refs):
        # refs = (w0, b0, w1, b1, ..., w_{L-1}, b_{L-1}, out_ref)
        out_ref = refs[-1]
        h = x_ref[...]
        for layer in range(num_layers):
            w_ref = refs[2 * layer]
            b_ref = refs[2 * layer + 1]
            # Cast to the weight operand dtype only when needed (bf16-x fast path:
            # if x and W are both bf16 there is no first-layer cast at all).
            lhs = h if h.dtype == w_ref.dtype else h.astype(w_ref.dtype)
            h = jnp.dot(lhs, w_ref[...],
                        preferred_element_type=jnp.float32) + b_ref[...]
            if layer < num_layers - 1:
                h = jnp.maximum(h, 0.0)
        out_ref[...] = h.astype(out_ref.dtype)

    return kernel


# ----------------------------------------------------------------------------
# Batch-tile planning (robust for any B; see header comment)
# ----------------------------------------------------------------------------
_MAX_TB = 2048        # per-step VMEM safe on v5e (16 MiB scoped) and v7x (32 MiB scoped)
_PREF_TB = 512        # keep tiles >= 512 rows when the batch is large
_TARGET_STEPS = 4     # ~2 grid steps per TensorCore on v7x, pipelined DMA everywhere


def _plan_batch(B: int):
    """Return (padded_batch, batch_tile); tile is a multiple of 8 and divides padded_batch."""
    b8 = _round_up(B, 8)
    if b8 // 8 < _TARGET_STEPS:
        # Tiny batch: one multiple-of-8 tile; splitting would only process padding rows.
        return b8, b8
    tb = _round_up(-(-B // _TARGET_STEPS), 8)
    if B >= _TARGET_STEPS * _PREF_TB:
        tb = max(tb, _PREF_TB)
    tb = min(tb, _MAX_TB)
    bp = _round_up(B, tb)
    return bp, tb


# ----------------------------------------------------------------------------
# Parameter preparation (run once, outside jit)
# ----------------------------------------------------------------------------
def prepare_params(params, operand_dtype=jnp.bfloat16):
    """Zero-pad every HIDDEN layer's output dim to a multiple of 128 (lane-dense
    intermediates, VMEM-resident weights) and cast weights to the MXU operand dtype.
    The LAST layer's output dim is left unpadded so the HBM writeback carries only
    the useful lanes.  Biases stay f32.

    Padding is exact: padded weight rows/columns and bias lanes are zero, so the
    extra lanes carry zeros through ReLU and contribute nothing downstream.
    """
    padded = []
    prev_out = params[0][0].shape[0]  # input feature dim stays unpadded
    num_layers = len(params)
    for li, (w, b) in enumerate(params):
        d_in, d_out = w.shape
        is_last = (li == num_layers - 1)
        d_out_p = d_out if is_last else _round_up(d_out, 128)
        wp = jnp.zeros((prev_out, d_out_p), jnp.float32)
        wp = wp.at[:d_in, :d_out].set(w.astype(jnp.float32))
        bp = jnp.zeros((1, d_out_p), jnp.float32)
        bp = bp.at[:, :d_out].set(b.astype(jnp.float32))
        padded.append((wp.astype(operand_dtype), bp))
        prev_out = d_out_p
    return padded


# ----------------------------------------------------------------------------
# Forward pass
# ----------------------------------------------------------------------------
@functools.partial(jax.jit, static_argnames=("batch_block",))
def fully_connected_network(x, padded_params, *, batch_block=None):
    """Run the fused MLP Pallas kernel.

    x:             [B, input_size] (f32, or bf16 if the weights are bf16)
    padded_params: output of prepare_params() — list of (W [in_p, out_p], b [1, out_p]);
                   the last layer's out dim is the true (unpadded) output width.
    Returns [B, output_size] float32.
    """
    B, in_dim = x.shape
    out_dim = padded_params[-1][0].shape[1]   # true output width (unpadded)
    num_layers = len(padded_params)

    if batch_block is None:
        b_padded, tb = _plan_batch(B)
    else:
        tb = batch_block
        assert tb % 8 == 0, "batch_block must be a multiple of 8 (f32 sublane)"
        b_padded = _round_up(B, tb)

    xp = x if b_padded == B else jnp.pad(x, ((0, b_padded - B), (0, 0)))

    flat_params = [a for wb in padded_params for a in wb]

    # x and the output are tiled along the batch axis; weights/biases are whole-array
    # blocks with a constant index_map, so they are DMA'd once and stay VMEM-resident.
    in_specs = [pl.BlockSpec((tb, in_dim), lambda i: (i, 0))]
    in_specs += [pl.BlockSpec(p.shape, lambda i: (0, 0)) for p in flat_params]

    out = pl.pallas_call(
        _make_mlp_kernel(num_layers),
        out_shape=jax.ShapeDtypeStruct((b_padded, out_dim), jnp.float32),
        grid_spec=pltpu.PrefetchScalarGridSpec(
            num_scalar_prefetch=0,
            grid=(b_padded // tb,),
            in_specs=in_specs,
            # Last dim equals the full array dim (= out_size): legal for any width,
            # and the HBM writeback is only out_size lanes wide.
            out_specs=pl.BlockSpec((tb, out_dim), lambda i: (i, 0)),
        ),
        compiler_params=pltpu.CompilerParams(
            dimension_semantics=("parallel",)),
    )(xp, *flat_params)

    return out[:B]


# ----------------------------------------------------------------------------
# Synthetic init + pure-JAX reference
# ----------------------------------------------------------------------------
def init_params(key, input_size, output_size, hidden_layer_widths):
    """Deterministic synthetic init (PyTorch-style uniform bound 1/sqrt(fan_in))."""
    widths = [input_size] + list(hidden_layer_widths) + [output_size]
    params = []
    for d_in, d_out in zip(widths[:-1], widths[1:]):
        key, kw, kb = jax.random.split(key, 3)
        bound = 1.0 / (d_in ** 0.5)
        w = jax.random.uniform(kw, (d_in, d_out), jnp.float32, -bound, bound)
        b = jax.random.uniform(kb, (1, d_out), jnp.float32, -bound, bound)
        params.append((w, b))
    return params


def reference_forward(x, params):
    """Pure-JAX f32 reference mirroring the PyTorch forward pass."""
    h = x
    for i, (w, b) in enumerate(params):
        h = h @ w + b
        if i < len(params) - 1:
            h = jnp.maximum(h, 0.0)
    return h


if __name__ == "__main__":
    input_size = 32          # e.g. banana-collector state size (synthetic)
    output_size = 4          # action-value head
    hidden = [64, 64, 64]    # default hidden_layer_widths

    key = jax.random.PRNGKey(0)
    params = init_params(key, input_size, output_size, hidden)
    p_f32 = prepare_params(params, operand_dtype=jnp.float32)
    p_bf16 = prepare_params(params, operand_dtype=jnp.bfloat16)

    # Two batch sizes: a tiny single-step one and one that exercises row padding +
    # a multi-step pipelined grid.
    for batch in (8, 33):
        key, kx = jax.random.split(key)
        x = jax.random.normal(kx, (batch, input_size), jnp.float32)
        ref = reference_forward(x, params)

        # f32-operand path: exact-semantics check against the reference.
        out_f32 = jax.block_until_ready(fully_connected_network(x, p_f32))
        assert out_f32.shape == (batch, output_size)
        assert jnp.allclose(out_f32, ref, atol=1e-3, rtol=1e-3), \
            f"f32 mismatch vs reference (batch={batch})"

        # bf16-operand path (MXU-native on v6e/v7x), f32 accumulation.
        # NOTE: 4 compounding bf16 operand casts; if Q-value accuracy ever regresses,
        # keep the first/last layer operands f32 via prepare_params(operand_dtype=f32).
        out_bf16 = jax.block_until_ready(fully_connected_network(x, p_bf16))
        assert out_bf16.shape == (batch, output_size)
        assert jnp.allclose(out_bf16, ref, atol=5e-2, rtol=5e-2), \
            f"bf16 mismatch vs reference (batch={batch})"

    print("KERNEL_OK")
</pallas_src>

<mosaic_0001>
module attributes {stable_mosaic.version = 11 : i64} {
  func.func @kernel(%arg0: i32, %arg1: memref<8x32xf32, #tpu.memory_space<vmem>>, %arg2: memref<32x128xf32, #tpu.memory_space<vmem>>, %arg3: memref<1x128xf32, #tpu.memory_space<vmem>>, %arg4: memref<128x128xf32, #tpu.memory_space<vmem>>, %arg5: memref<1x128xf32, #tpu.memory_space<vmem>>, %arg6: memref<128x128xf32, #tpu.memory_space<vmem>>, %arg7: memref<1x128xf32, #tpu.memory_space<vmem>>, %arg8: memref<128x4xf32, #tpu.memory_space<vmem>>, %arg9: memref<1x4xf32, #tpu.memory_space<vmem>>, %arg10: memref<8x4xf32, #tpu.memory_space<vmem>>) attributes {dimension_semantics = [#tpu.dimension_semantics<parallel>], iteration_bounds = array<i64: 1>, scalar_prefetch = 0 : i64, scratch_operands = 0 : i64, tpu.core_type = #tpu.core_type<tc>, window_params = [{transform_indices = @transform_0, window_bounds = array<i64: 8, 32>}, {pipeline_mode = #tpu.pipeline_mode<synchronous>, transform_indices = @transform_1, window_bounds = array<i64: 32, 128>}, {pipeline_mode = #tpu.pipeline_mode<synchronous>, transform_indices = @transform_2, window_bounds = array<i64: 1, 128>}, {pipeline_mode = #tpu.pipeline_mode<synchronous>, transform_indices = @transform_3, window_bounds = array<i64: 128, 128>}, {pipeline_mode = #tpu.pipeline_mode<synchronous>, transform_indices = @transform_4, window_bounds = array<i64: 1, 128>}, {pipeline_mode = #tpu.pipeline_mode<synchronous>, transform_indices = @transform_5, window_bounds = array<i64: 128, 128>}, {pipeline_mode = #tpu.pipeline_mode<synchronous>, transform_indices = @transform_6, window_bounds = array<i64: 1, 128>}, {pipeline_mode = #tpu.pipeline_mode<synchronous>, transform_indices = @transform_7, window_bounds = array<i64: 128, 4>}, {pipeline_mode = #tpu.pipeline_mode<synchronous>, transform_indices = @transform_8, window_bounds = array<i64: 1, 4>}, {transform_indices = @transform_9, window_bounds = array<i64: 8, 4>}]} {
    %c0 = arith.constant 0 : index
    %c0_0 = arith.constant 0 : index
    %0 = vector.load %arg1[%c0, %c0_0] : memref<8x32xf32, #tpu.memory_space<vmem>>, vector<8x32xf32>
    %c0_1 = arith.constant 0 : index
    %c0_2 = arith.constant 0 : index
    %1 = vector.load %arg2[%c0_1, %c0_2] : memref<32x128xf32, #tpu.memory_space<vmem>>, vector<32x128xf32>
    %cst = arith.constant dense<0.000000e+00> : vector<8x128xf32>
    %2 = tpu.matmul %0, %1, %cst {dimension_numbers = #tpu.dot_dimension_numbers<[1], [0], [0], [1], [0, 0, 1, 1], [], []>} : vector<8x32xf32>, vector<32x128xf32>, vector<8x128xf32> -> vector<8x128xf32>
    %c0_3 = arith.constant 0 : index
    %c0_4 = arith.constant 0 : index
    %3 = vector.load %arg3[%c0_3, %c0_4] : memref<1x128xf32, #tpu.memory_space<vmem>>, vector<1x128xf32>
    %4 = vector.broadcast %3 : vector<1x128xf32> to vector<8x128xf32>
    %5 = arith.addf %2, %4 : vector<8x128xf32>
    %cst_5 = arith.constant 0.000000e+00 : f32
    %6 = vector.broadcast %cst_5 : f32 to vector<8x128xf32>
    %7 = arith.maximumf %5, %6 : vector<8x128xf32>
    %c0_6 = arith.constant 0 : index
    %c0_7 = arith.constant 0 : index
    %8 = vector.load %arg4[%c0_6, %c0_7] : memref<128x128xf32, #tpu.memory_space<vmem>>, vector<128x128xf32>
    %cst_8 = arith.constant dense<0.000000e+00> : vector<8x128xf32>
    %9 = tpu.matmul %7, %8, %cst_8 {dimension_numbers = #tpu.dot_dimension_numbers<[1], [0], [0], [1], [0, 0, 1, 1], [], []>} : vector<8x128xf32>, vector<128x128xf32>, vector<8x128xf32> -> vector<8x128xf32>
    %c0_9 = arith.constant 0 : index
    %c0_10 = arith.constant 0 : index
    %10 = vector.load %arg5[%c0_9, %c0_10] : memref<1x128xf32, #tpu.memory_space<vmem>>, vector<1x128xf32>
    %11 = vector.broadcast %10 : vector<1x128xf32> to vector<8x128xf32>
    %12 = arith.addf %9, %11 : vector<8x128xf32>
    %cst_11 = arith.constant 0.000000e+00 : f32
    %13 = vector.broadcast %cst_11 : f32 to vector<8x128xf32>
    %14 = arith.maximumf %12, %13 : vector<8x128xf32>
    %c0_12 = arith.constant 0 : index
    %c0_13 = arith.constant 0 : index
    %15 = vector.load %arg6[%c0_12, %c0_13] : memref<128x128xf32, #tpu.memory_space<vmem>>, vector<128x128xf32>
    %cst_14 = arith.constant dense<0.000000e+00> : vector<8x128xf32>
    %16 = tpu.matmul %14, %15, %cst_14 {dimension_numbers = #tpu.dot_dimension_numbers<[1], [0], [0], [1], [0, 0, 1, 1], [], []>} : vector<8x128xf32>, vector<128x128xf32>, vector<8x128xf32> -> vector<8x128xf32>
    %c0_15 = arith.constant 0 : index
    %c0_16 = arith.constant 0 : index
    %17 = vector.load %arg7[%c0_15, %c0_16] : memref<1x128xf32, #tpu.memory_space<vmem>>, vector<1x128xf32>
    %18 = vector.broadcast %17 : vector<1x128xf32> to vector<8x128xf32>
    %19 = arith.addf %16, %18 : vector<8x128xf32>
    %cst_17 = arith.constant 0.000000e+00 : f32
    %20 = vector.broadcast %cst_17 : f32 to vector<8x128xf32>
    %21 = arith.maximumf %19, %20 : vector<8x128xf32>
    %c0_18 = arith.constant 0 : index
    %c0_19 = arith.constant 0 : index
    %22 = vector.load %arg8[%c0_18, %c0_19] : memref<128x4xf32, #tpu.memory_space<vmem>>, vector<128x4xf32>
    %cst_20 = arith.constant dense<0.000000e+00> : vector<8x4xf32>
    %23 = tpu.matmul %21, %22, %cst_20 {dimension_numbers = #tpu.dot_dimension_numbers<[1], [0], [0], [1], [0, 0, 1, 1], [], []>} : vector<8x128xf32>, vector<128x4xf32>, vector<8x4xf32> -> vector<8x4xf32>
    %c0_21 = arith.constant 0 : index
    %c0_22 = arith.constant 0 : index
    %24 = vector.load %arg9[%c0_21, %c0_22] : memref<1x4xf32, #tpu.memory_space<vmem>>, vector<1x4xf32>
    %25 = vector.broadcast %24 : vector<1x4xf32> to vector<8x4xf32>
    %26 = arith.addf %23, %25 : vector<8x4xf32>
    %c0_23 = arith.constant 0 : index
    %c0_24 = arith.constant 0 : index
    %27 = vector.load %arg10[%c0_23, %c0_24] : memref<8x4xf32, #tpu.memory_space<vmem>>, vector<8x4xf32>
    tpu.vector_store %arg10[%c0_23, %c0_24], %26 {strides = array<i32>} : memref<8x4xf32, #tpu.memory_space<vmem>>, vector<8x4xf32>,
    return
  }
  func.func @transform_0(%arg0: i32) -> (i32, i32) {
    %c0_i32 = arith.constant 0 : i32
    %c0_i32_0 = arith.constant 0 : i32
    return %arg0, %c0_i32 : i32, i32
  }
  func.func @transform_1(%arg0: i32) -> (i32, i32) {
    %c0_i32 = arith.constant 0 : i32
    %c0_i32_0 = arith.constant 0 : i32
    %c0_i32_1 = arith.constant 0 : i32
    return %c0_i32, %c0_i32_0 : i32, i32
  }
  func.func @transform_2(%arg0: i32) -> (i32, i32) {
    %c0_i32 = arith.constant 0 : i32
    %c0_i32_0 = arith.constant 0 : i32
    %c0_i32_1 = arith.constant 0 : i32
    return %c0_i32, %c0_i32_0 : i32, i32
  }
  func.func @transform_3(%arg0: i32) -> (i32, i32) {
    %c0_i32 = arith.constant 0 : i32
    %c0_i32_0 = arith.constant 0 : i32
    %c0_i32_1 = arith.constant 0 : i32
    return %c0_i32, %c0_i32_0 : i32, i32
  }
  func.func @transform_4(%arg0: i32) -> (i32, i32) {
    %c0_i32 = arith.constant 0 : i32
    %c0_i32_0 = arith.constant 0 : i32
    %c0_i32_1 = arith.constant 0 : i32
    return %c0_i32, %c0_i32_0 : i32, i32
  }
  func.func @transform_5(%arg0: i32) -> (i32, i32) {
    %c0_i32 = arith.constant 0 : i32
    %c0_i32_0 = arith.constant 0 : i32
    %c0_i32_1 = arith.constant 0 : i32
    return %c0_i32, %c0_i32_0 : i32, i32
  }
  func.func @transform_6(%arg0: i32) -> (i32, i32) {
    %c0_i32 = arith.constant 0 : i32
    %c0_i32_0 = arith.constant 0 : i32
    %c0_i32_1 = arith.constant 0 : i32
    return %c0_i32, %c0_i32_0 : i32, i32
  }
  func.func @transform_7(%arg0: i32) -> (i32, i32) {
    %c0_i32 = arith.constant 0 : i32
    %c0_i32_0 = arith.constant 0 : i32
    %c0_i32_1 = arith.constant 0 : i32
    return %c0_i32, %c0_i32_0 : i32, i32
  }
  func.func @transform_8(%arg0: i32) -> (i32, i32) {
    %c0_i32 = arith.constant 0 : i32
    %c0_i32_0 = arith.constant 0 : i32
    %c0_i32_1 = arith.constant 0 : i32
    return %c0_i32, %c0_i32_0 : i32, i32
  }
  func.func @transform_9(%arg0: i32) -> (i32, i32) {
    %c0_i32 = arith.constant 0 : i32
    %c0_i32_0 = arith.constant 0 : i32
    return %arg0, %c0_i32 : i32, i32
  }
}

</mosaic_0001>

<llo_original>
// kernel: fully_connected_network.1
$region0: #{fully_connected_network.1}
  #allocation0 [shape = 'u32[]', space=smem, size = 0x4, offset = 0x4, fixed_abs, tag = 'smem constant byte address 0x4 - core index']
  #allocation1 [shape = 'u32[72,128]{1,0:T(1,128)}', space=vmem, size = 0x9000, scoped, tag = 'internal scratch']
  %s0 = inlined_call_operand.hbm [shape: f32[8,32], index: 0, kind: input, shape index: {}]
  %s1 = inlined_call_operand.hbm [shape: f32[32,128], index: 1, kind: input, shape index: {}]
  %s2 = inlined_call_operand.vmem [shape: f32[1,128], index: 2, kind: input, shape index: {}]
  %s3 = inlined_call_operand.vmem [shape: f32[128,128], index: 3, kind: input, shape index: {}]
  %s4 = inlined_call_operand.vmem [shape: f32[1,128], index: 4, kind: input, shape index: {}]
  %s5 = inlined_call_operand.hbm [shape: f32[128,128], index: 5, kind: input, shape index: {}]
  %s6 = inlined_call_operand.vmem [shape: f32[1,128], index: 6, kind: input, shape index: {}]
  %s7 = inlined_call_operand.vmem [shape: f32[128,4], index: 7, kind: input, shape index: {}]
  %s8 = inlined_call_operand.vmem [shape: f32[1,4], index: 8, kind: input, shape index: {}]
  %s9 = inlined_call_operand.vmem [shape: f32[8,4], index: 9, kind: output, shape index: {}]
  %s10 = sld [smem:[#allocation0]]
  $region58: #{fully_connected_network.1} parent=0
    _
  %s12 = ssub.s32 1, %s10
  %s13 = scalar_select 0, %s12, %s10
  $region1: #{fully_connected_network.1} parent=0
    #allocation2 [shape = 'u8[4096]{0}', space=vmem, size = 0x1000, scoped, tag = 'input window, operand 0, single buffered']
    #allocation3 [shape = 's32[1]{0}', space=sflag, size = 0x4, scoped, tag = 'scoped memory for fully_connected_network.1']
    #allocation4 [shape = 'u8[16384]{0}', space=vmem, size = 0x4000, scoped, tag = 'input window, operand 1, single buffered']
    #allocation5 [shape = 's32[1]{0}', space=sflag, size = 0x4, scoped, tag = 'scoped memory for fully_connected_network.1']
    #allocation6 [shape = 'u8[65536]{0}', space=vmem, size = 0x10000, scoped, tag = 'input window, operand 5, single buffered']
    %14 = vsyncpa [#allocation3], 0
    %15 = vsyncpa [#allocation5], 0
    // Predicated region
    $region2: #{fully_connected_network.1} parent=1 // pred_check
      _
    $region3: #{fully_connected_network.1} parent=1 // pred_check_branch
      %17 = sbr.rel (0) target = $region5
    $region4: #{fully_connected_network.1} parent=1 // pred_region
      %19 = vsyncadd [#allocation3], 0
      %s21 = sshll.u32 %s0, 4
      %s22 = int_to_ptr.hbm [resolvable:$true] %s21
      %s23 = sshll.u32 [#allocation2], 4
      %s24 = int_to_ptr.vmem [resolvable:$true] %s23
      %26 = dma.hbm_to_vmem [thread:$0]  %s22, 128, %s24, [#allocation3]
    $region5: #{fully_connected_network.1} parent=1 // pred_fallthru
      _
    // Predicated region
    $region6: #{fully_connected_network.1} parent=1 // pred_check
      _
    $region7: #{fully_connected_network.1} parent=1 // pred_check_branch
      %28 = sbr.rel (0) target = $region9
    $region8: #{fully_connected_network.1} parent=1 // pred_region
      %30 = vsyncadd [#allocation5], 0
      %s31 = sshll.u32 %s1, 4
      %s32 = int_to_ptr.hbm [resolvable:$true] %s31
      %s33 = sshll.u32 [#allocation4], 4
      %s34 = int_to_ptr.vmem [resolvable:$true] %s33
      %39 = dma.hbm_to_vmem [thread:$0]  %s32, 512, %s34, [#allocation5], 128, 128, 8
    $region9: #{fully_connected_network.1} parent=1 // pred_fallthru
      _
    // Predicated region
    $region10: #{fully_connected_network.1} parent=1 // pred_check
      _
    $region11: #{fully_connected_network.1} parent=1 // pred_check_branch
      %41 = sbr.rel (0) target = $region13
    $region12: #{fully_connected_network.1} parent=1 // pred_region
      _
    $region13: #{fully_connected_network.1} parent=1 // pred_fallthru
      _
    // Predicated region
    $region14: #{fully_connected_network.1} parent=1 // pred_check
      _
    $region15: #{fully_connected_network.1} parent=1 // pred_check_branch
      %43 = sbr.rel (0) target = $region17
    $region16: #{fully_connected_network.1} parent=1 // pred_region
      _
    $region17: #{fully_connected_network.1} parent=1 // pred_fallthru
      _
    // Predicated region
    $region18: #{fully_connected_network.1} parent=1 // pred_check
      _
    $region19: #{fully_connected_network.1} parent=1 // pred_check_branch
      %45 = sbr.rel (0) target = $region21
    $region20: #{fully_connected_network.1} parent=1 // pred_region
      _
    $region21: #{fully_connected_network.1} parent=1 // pred_fallthru
      _
    // Predicated region
    $region22: #{fully_connected_network.1} parent=1 // pred_check
      _
    $region23: #{fully_connected_network.1} parent=1 // pred_check_branch
      %47 = sbr.rel (0) target = $region25
    $region24: #{fully_connected_network.1} parent=1 // pred_region
      %49 = vsyncadd [#allocation5], 0
      %s50 = sshll.u32 %s5, 4
      %s51 = int_to_ptr.hbm [resolvable:$true] %s50
      %s52 = sshll.u32 [#allocation6], 4
      %s53 = int_to_ptr.vmem [resolvable:$true] %s52
      %58 = dma.hbm_to_vmem [thread:$0]  %s51, 2048, %s53, [#allocation5], 128, 128, 8
    $region25: #{fully_connected_network.1} parent=1 // pred_fallthru
      _
    // Predicated region
    $region26: #{fully_connected_network.1} parent=1 // pred_check
      _
    $region27: #{fully_connected_network.1} parent=1 // pred_check_branch
      %60 = sbr.rel (0) target = $region29
    $region28: #{fully_connected_network.1} parent=1 // pred_region
      _
    $region29: #{fully_connected_network.1} parent=1 // pred_fallthru
      _
    // Predicated region
    $region30: #{fully_connected_network.1} parent=1 // pred_check
      _
    $region31: #{fully_connected_network.1} parent=1 // pred_check_branch
      %62 = sbr.rel (0) target = $region33
    $region32: #{fully_connected_network.1} parent=1 // pred_region
      _
    $region33: #{fully_connected_network.1} parent=1 // pred_fallthru
      _
    // Predicated region
    $region34: #{fully_connected_network.1} parent=1 // pred_check
      _
    $region35: #{fully_connected_network.1} parent=1 // pred_check_branch
      %64 = sbr.rel (0) target = $region37
    $region36: #{fully_connected_network.1} parent=1 // pred_region
      _
    $region37: #{fully_connected_network.1} parent=1 // pred_fallthru
      _
    // Predicated region
    $region38: #{fully_connected_network.1} parent=1 // pred_check
      _
    $region39: #{fully_connected_network.1} parent=1 // pred_check_branch
      %66 = sbr.rel (0) target = $region41
    $region40: #{fully_connected_network.1} parent=1 // pred_region
      %68 = dma.done [#allocation3], 128
    $region41: #{fully_connected_network.1} parent=1 // pred_fallthru
      _
    // Predicated region
    $region42: #{fully_connected_network.1} parent=1 // pred_check
      _
    $region43: #{fully_connected_network.1} parent=1 // pred_check_branch
      %70 = sbr.rel (0) target = $region45
    $region44: #{fully_connected_network.1} parent=1 // pred_region
      %72 = dma.done [#allocation5], 512
    $region45: #{fully_connected_network.1} parent=1 // pred_fallthru
      _
    // Predicated region
    $region46: #{fully_connected_network.1} parent=1 // pred_check
      _
    $region47: #{fully_connected_network.1} parent=1 // pred_check_branch
      %74 = sbr.rel (0) target = $region49
    $region48: #{fully_connected_network.1} parent=1 // pred_region
      %76 = dma.done [#allocation5], 2048
    $region49: #{fully_connected_network.1} parent=1 // pred_fallthru
      _
    %v77 = vld [vmem:[#allocation2] sm:$0xff]
    %v78 = vld [vmem:[#allocation4] sm:$0xff]
    %v79 = vld [vmem:[#allocation4 + $0x8] sm:$0xff]
    %v80 = vld [vmem:[#allocation4 + $0x10] sm:$0xff]
    %v81 = vld [vmem:[#allocation4 + $0x18] sm:$0xff]
    %v82 = vld [vmem:[%s2] sm:$0x1]
    %v84 = vperm.slane %v82, 0
    %vm86 = vcmask 261120
    %v88 = vsel %vm86, %v77, 0
    %90 = vmatpush.msra.mxu0 0.0
    %91 = vmatpush.msra.mxu0 0.0
    %92 = vmatpush.msra.mxu0 0.0
    %93 = vmatpush.msra.mxu0 0.0
    %94 = vmatpush.msra.mxu0 0.0
    %95 = vmatpush.msra.mxu0 0.0
    %96 = vmatpush.msra.mxu0 0.0
    %97 = vmatpush.msra.mxu0 0.0
    %98 = vmatpush.msra.mxu0 0.0
    %99 = vmatpush.msra.mxu0 0.0
    %100 = vmatpush.msra.mxu0 0.0
    %101 = vmatpush.msra.mxu0 0.0
    %102 = vmatpush.msra.mxu0 %v81
    %103 = vmatpush.msra.mxu0 %v80
    %104 = vmatpush.msra.mxu0 %v79
    %105 = vmatpush.msra.mxu0 %v78
    %106 = vmatmul.f32.gmra.mxu0 %v88
    %v107 = vpop.f32.mrf.mxu0
    %v108 = vadd.f32 %v84, %v107
    %109 = vdwg.mxu0
    %v110 = vmax.f32 %v108, 0.0
    %v111 = vld [vmem:[%s3] sm:$0xff]
    %v112 = vld [vmem:[%s3 + $0x8] sm:$0xff]
    %v113 = vld [vmem:[%s3 + $0x10] sm:$0xff]
    %v114 = vld [vmem:[%s3 + $0x18] sm:$0xff]
    %v115 = vld [vmem:[%s3 + $0x20] sm:$0xff]
    %v116 = vld [vmem:[%s3 + $0x28] sm:$0xff]
    %v117 = vld [vmem:[%s3 + $0x30] sm:$0xff]
    %v118 = vld [vmem:[%s3 + $0x38] sm:$0xff]
    %v119 = vld [vmem:[%s3 + $0x40] sm:$0xff]
    %v120 = vld [vmem:[%s3 + $0x48] sm:$0xff]
    %v121 = vld [vmem:[%s3 + $0x50] sm:$0xff]
    %v122 = vld [vmem:[%s3 + $0x58] sm:$0xff]
    %v123 = vld [vmem:[%s3 + $0x60] sm:$0xff]
    %v124 = vld [vmem:[%s3 + $0x68] sm:$0xff]
    %v125 = vld [vmem:[%s3 + $0x70] sm:$0xff]
    %v126 = vld [vmem:[%s3 + $0x78] sm:$0xff]
    %v127 = vld [vmem:[%s4] sm:$0x1]
    %v129 = vperm.slane %v127, 0
    %131 = vmatpush.msra.mxu0 %v126
    %132 = vmatpush.msra.mxu0 %v125
    %133 = vmatpush.msra.mxu0 %v124
    %134 = vmatpush.msra.mxu0 %v123
    %135 = vmatpush.msra.mxu0 %v122
    %136 = vmatpush.msra.mxu0 %v121
    %137 = vmatpush.msra.mxu0 %v120
    %138 = vmatpush.msra.mxu0 %v119
    %139 = vmatpush.msra.mxu0 %v118
    %140 = vmatpush.msra.mxu0 %v117
    %141 = vmatpush.msra.mxu0 %v116
    %142 = vmatpush.msra.mxu0 %v115
    %143 = vmatpush.msra.mxu0 %v114
    %144 = vmatpush.msra.mxu0 %v113
    %145 = vmatpush.msra.mxu0 %v112
    %146 = vmatpush.msra.mxu0 %v111
    %147 = vmatmul.f32.gmra.mxu0 %v110
    %v148 = vpop.f32.mrf.mxu0
    %v149 = vadd.f32 %v129, %v148
    %150 = vdwg.mxu0
    %v151 = vmax.f32 %v149, 0.0
    %v152 = vld [vmem:[#allocation6] sm:$0xff]
    %v153 = vld [vmem:[#allocation6 + $0x8] sm:$0xff]
    %v154 = vld [vmem:[#allocation6 + $0x10] sm:$0xff]
    %v155 = vld [vmem:[#allocation6 + $0x18] sm:$0xff]
    %v156 = vld [vmem:[#allocation6 + $0x20] sm:$0xff]
    %v157 = vld [vmem:[#allocation6 + $0x28] sm:$0xff]
    %v158 = vld [vmem:[#allocation6 + $0x30] sm:$0xff]
    %v159 = vld [vmem:[#allocation6 + $0x38] sm:$0xff]
    %v160 = vld [vmem:[#allocation6 + $0x40] sm:$0xff]
    %v161 = vld [vmem:[#allocation6 + $0x48] sm:$0xff]
    %v162 = vld [vmem:[#allocation6 + $0x50] sm:$0xff]
    %v163 = vld [vmem:[#allocation6 + $0x58] sm:$0xff]
    %v164 = vld [vmem:[#allocation6 + $0x60] sm:$0xff]
    %v165 = vld [vmem:[#allocation6 + $0x68] sm:$0xff]
    %v166 = vld [vmem:[#allocation6 + $0x70] sm:$0xff]
    %v167 = vld [vmem:[#allocation6 + $0x78] sm:$0xff]
    %v168 = vld [vmem:[%s6] sm:$0x1]
    %v170 = vperm.slane %v168, 0
    %172 = vmatpush.msra.mxu0 %v167
    %173 = vmatpush.msra.mxu0 %v166
    %174 = vmatpush.msra.mxu0 %v165
    %175 = vmatpush.msra.mxu0 %v164
    %176 = vmatpush.msra.mxu0 %v163
    %177 = vmatpush.msra.mxu0 %v162
    %178 = vmatpush.msra.mxu0 %v161
    %179 = vmatpush.msra.mxu0 %v160
    %180 = vmatpush.msra.mxu0 %v159
    %181 = vmatpush.msra.mxu0 %v158
    %182 = vmatpush.msra.mxu0 %v157
    %183 = vmatpush.msra.mxu0 %v156
    %184 = vmatpush.msra.mxu0 %v155
    %185 = vmatpush.msra.mxu0 %v154
    %186 = vmatpush.msra.mxu0 %v153
    %187 = vmatpush.msra.mxu0 %v152
    %188 = vmatmul.f32.gmra.mxu0 %v151
    %v189 = vpop.f32.mrf.mxu0
    %v190 = vadd.f32 %v170, %v189
    %191 = vdwg.mxu0
    %v192 = vmax.f32 %v190, 0.0
    %v193 = vld [vmem:[%s7] sm:$0xff]
    %v194 = vld [vmem:[%s7 + $0x8] sm:$0xff]
    %v195 = vld [vmem:[%s7 + $0x10] sm:$0xff]
    %v196 = vld [vmem:[%s7 + $0x18] sm:$0xff]
    %v197 = vld [vmem:[%s7 + $0x20] sm:$0xff]
    %v198 = vld [vmem:[%s7 + $0x28] sm:$0xff]
    %v199 = vld [vmem:[%s7 + $0x30] sm:$0xff]
    %v200 = vld [vmem:[%s7 + $0x38] sm:$0xff]
    %v201 = vld [vmem:[%s7 + $0x40] sm:$0xff]
    %v202 = vld [vmem:[%s7 + $0x48] sm:$0xff]
    %v203 = vld [vmem:[%s7 + $0x50] sm:$0xff]
    %v204 = vld [vmem:[%s7 + $0x58] sm:$0xff]
    %v205 = vld [vmem:[%s7 + $0x60] sm:$0xff]
    %v206 = vld [vmem:[%s7 + $0x68] sm:$0xff]
    %v207 = vld [vmem:[%s7 + $0x70] sm:$0xff]
    %v208 = vld [vmem:[%s7 + $0x78] sm:$0xff]
    %v209 = vld [vmem:[%s8] sm:$0x1]
    %v211 = vperm.slane %v209, 0
    %213 = vmatpush.msra.mxu0 %v208
    %214 = vmatpush.msra.mxu0 %v207
    %215 = vmatpush.msra.mxu0 %v206
    %216 = vmatpush.msra.mxu0 %v205
    %217 = vmatpush.msra.mxu0 %v204
    %218 = vmatpush.msra.mxu0 %v203
    %219 = vmatpush.msra.mxu0 %v202
    %220 = vmatpush.msra.mxu0 %v201
    %221 = vmatpush.msra.mxu0 %v200
    %222 = vmatpush.msra.mxu0 %v199
    %223 = vmatpush.msra.mxu0 %v198
    %224 = vmatpush.msra.mxu0 %v197
    %225 = vmatpush.msra.mxu0 %v196
    %226 = vmatpush.msra.mxu0 %v195
    %227 = vmatpush.msra.mxu0 %v194
    %228 = vmatpush.msra.mxu0 %v193
    %229 = vmatmul.f32.gmra.mxu0 %v192
    %v230 = vpop.f32.mrf.mxu0
    %v231 = vadd.f32 %v211, %v230
    %232 = vdwg.mxu0
    %vm233 = vcmask 31744
    %234 = vst.msk [vmem:[%s9] sm:$0xff] %vm233, %v231
    // Predicated region
    $region50: #{fully_connected_network.1} parent=1 // pred_check
      _
    $region51: #{fully_connected_network.1} parent=1 // pred_check_branch
      %236 = sbr.rel (0) target = $region53
    $region52: #{fully_connected_network.1} parent=1 // pred_region
      _
    $region53: #{fully_connected_network.1} parent=1 // pred_fallthru
      _
    // Predicated region
    $region54: #{fully_connected_network.1} parent=1 // pred_check
      _
    $region55: #{fully_connected_network.1} parent=1 // pred_check_branch
      %238 = sbr.rel (0) target = $region57
    $region56: #{fully_connected_network.1} parent=1 // pred_region
      _
    $region57: #{fully_connected_network.1} parent=1 // pred_fallthru
      _
    %239 = vsyncpa [#allocation3], 1
    %240 = vsyncpa [#allocation5], 1

</llo_original>
